<compile_context>
chip_gen: v6e
topology: v6e:2x2x1
jax: 0.10.0
libtpu: 0.0.40
codegen_flags: <defaults>
</compile_context>

<pallas_src>
import functools

import jax
import jax.numpy as jnp
from jax.experimental import pallas as pl
from jax.experimental.pallas import tpu as pltpu


def _round_up(x: int, m: int) -> int:
    return ((x + m - 1) // m) * m


def _vmem_capacity_bytes() -> int:
    """Physical per-TensorCore VMEM; conservative (v7x) fallback off-device."""
    try:
        cap = int(pltpu.get_tpu_info().vmem_capacity_bytes)
        if cap >= (16 << 20):
            return cap
    except Exception:
        pass
    return 64 << 20


def _tensorcore_count() -> int:
    """TensorCores visible to one Pallas kernel: 2 on v4/v5p/v7x, else 1."""
    try:
        kind = jax.devices()[0].device_kind.lower()
    except Exception:
        return 1
    if any(tag in kind for tag in ("v4", "v5p", "7")):
        return 2
    return 1


def _gce_kernel(logits_ref, targets_ref, weights_ref, num_ref, den_ref,
                num_acc, den_acc, *, q: float, ignore_index: int,
                n: int, tile: int, chunk: int, tiles_per_core: int):
    ci = pl.program_id(0)                       # core / outer (parallel) axis
    ti = pl.program_id(1)                       # tile index within this core

    @pl.when(ti == 0)
    def _():
        num_acc[...] = jnp.zeros_like(num_acc)
        den_acc[...] = jnp.zeros_like(den_acc)

    c_dim = logits_ref.shape[0]
    col0 = (ci * tiles_per_core + ti) * tile

    # Hoisted out of the chunk loop (JAX does not CSE broadcast/iota).
    cls = jax.lax.broadcasted_iota(jnp.int32, (c_dim, chunk), 0)
    lane = jax.lax.broadcasted_iota(jnp.int32, (1, chunk), 1)
    qf = jnp.float32(q)
    inv_q = jnp.float32(1.0 / q)

    # Statically unrolled sub-chunk loop: bounds the f32 cast / iota-select /
    # exp temporaries to the chunk size regardless of how big the DMA tile is.
    for s in range(tile // chunk):
        off = s * chunk                                     # static offset
        lg = logits_ref[:, pl.ds(off, chunk)].astype(jnp.float32)   # (C, chunk)
        tg = targets_ref[:, pl.ds(off, chunk)]                      # (1, chunk)
        wg = weights_ref[:, pl.ds(off, chunk)].astype(jnp.float32)  # (1, chunk)

        # Numerically stable logsumexp over the class (sublane) axis.
        m = jnp.max(lg, axis=0, keepdims=True)
        lse = m + jnp.log(jnp.sum(jnp.exp(lg - m), axis=0, keepdims=True))

        # Gather the target-class logit with a one-hot select (no dyn gather).
        z_t = jnp.sum(jnp.where(cls == tg, lg, 0.0), axis=0, keepdims=True)

        # p_t^q = exp(q * (z_t - lse));   loss = (1 - p_t^q) / q
        ptq = jnp.exp(qf * (z_t - lse))
        loss = (1.0 - ptq) * inv_q

        # Valid = column inside [0, n) AND target != ignore_index. Out-of-range
        # / padded columns may hold garbage (NaN/Inf); the where-select keeps
        # them out of the accumulators — do not fold this mask into lse itself.
        col = col0 + off + lane
        mask = jnp.logical_and(col < n, tg != ignore_index)

        num_acc[...] += jnp.where(mask, loss * wg, 0.0)
        den_acc[...] += jnp.where(mask, wg, 0.0)

    # Single cross-lane reduce + store per core, on the last tile.
    @pl.when(ti == pl.num_programs(1) - 1)
    def _():
        num_ref[...] = jnp.full(num_ref.shape, jnp.sum(num_acc[...]), jnp.float32)
        den_ref[...] = jnp.full(den_ref.shape, jnp.sum(den_acc[...]), jnp.float32)


def gce_loss(logits, targets, weights, *, q: float = 0.7,
             ignore_index: int = 1000, tile_n: int | None = None,
             chunk_n: int = 4096, num_cores: int | None = None,
             logits_class_major: bool = False):
    """Pallas GCE loss (weighted mean over non-ignored rows).

    logits:  [N, C] (or [C, N] with logits_class_major=True), f32 or bf16.
             bf16 is the preferred dtype on v6e/v7x: logits dominate HBM
             traffic and the in-kernel compute stays f32.
    targets: [N] int, weights: [N] float.
    Returns the scalar weighted-mean GCE loss (matches the PyTorch forward).
    NaN if every row is ignored (denominator 0), same as the reference.
    """
    if q == 0:
        raise NotImplementedError(
            "TODO(synk): q == 0 cross-entropy branch of GCELoss not implemented")

    if logits_class_major:
        c, n = logits.shape
        logits_cm = logits
        fused_transpose = False
    else:
        n, c = logits.shape
        # The transpose is fused into the pallas operand via allow_input_fusion
        # (no standalone HBM round-trip); callers that already hold class-major
        # logits should pass logits_class_major=True instead.
        logits_cm = jnp.transpose(logits)
        fused_transpose = True

    if c == 1:
        raise NotImplementedError(
            "TODO(synk): C == 1 sigmoid branch of GCELoss not implemented")

    targets2d = targets.astype(jnp.int32).reshape(1, n)      # [1, N] lane-dense
    weights2d = weights.astype(jnp.float32).reshape(1, n)    # [1, N] lane-dense

    itemsize = jnp.dtype(logits.dtype).itemsize
    # Real HBM bytes per sample (lane): logits column + int32 target + f32 weight.
    hbm_bytes_per_lane = c * itemsize + 8
    # Resident VMEM bytes per lane of tile: double-buffered logits block plus
    # the double-buffered (1, tile) targets/weights blocks, which pad their
    # sublane dim 1 -> 8 in VMEM (32 B/lane each).
    logits_lane_bytes = _round_up(c * itemsize, 32)
    vmem_bytes_per_lane = 2 * logits_lane_bytes + 2 * 32 + 2 * 32

    physical_vmem = _vmem_capacity_bytes()
    vmem_budget = int(physical_vmem * 0.45)          # headroom for temps/outputs
    if vmem_budget // vmem_bytes_per_lane < 128:
        # TODO(synk): class-axis tiling (streaming logsumexp over class chunks)
        # for very large C; without it the (C, 128) logits block alone exceeds
        # the VMEM budget (hardest on v7x, 64 MiB physical).
        raise NotImplementedError("class count too large for single-block logits")
    max_tile_vmem = (vmem_budget // vmem_bytes_per_lane) // 128 * 128

    if tile_n is None:
        # Per-step real-data target (~2 MiB) to amortize the ~0.35 us/step
        # pipeline overhead toward the HBM roofline.
        target_step_bytes = 2 << 20
        tile = _round_up(max(target_step_bytes // hbm_bytes_per_lane, 128), 128)
    else:
        tile = _round_up(tile_n, 128)
    tile = max(min(tile, _round_up(n, 128), max_tile_vmem), 128)

    chunk = max(min(_round_up(chunk_n, 128), tile), 128)
    tile = max((tile // chunk) * chunk, chunk)        # tile = whole chunks

    num_tiles = pl.cdiv(n, tile)
    if num_cores is None:
        num_cores = _tensorcore_count()
    num_cores = max(1, min(num_cores, num_tiles))
    tiles_per_core = pl.cdiv(num_tiles, num_cores)
    grid = (num_cores, tiles_per_core)

    resident_bytes = vmem_bytes_per_lane * tile + 2 * (8 * chunk * 4) + (2 << 20)
    vmem_limit = int(min(physical_vmem * 0.9,
                         max(resident_bytes + (8 << 20), 32 << 20)))

    def col_block(ci, ti):
        # Clamp fully out-of-range tiles back in bounds; their contribution is
        # masked to zero inside the kernel anyway.
        t = ci * tiles_per_core + ti
        return jnp.minimum(t, num_tiles - 1)

    kernel = functools.partial(
        _gce_kernel, q=q, ignore_index=ignore_index,
        n=n, tile=tile, chunk=chunk, tiles_per_core=tiles_per_core)

    num_out, den_out = pl.pallas_call(
        kernel,
        out_shape=(jax.ShapeDtypeStruct((num_cores * 8, 128), jnp.float32),
                   jax.ShapeDtypeStruct((num_cores * 8, 128), jnp.float32)),
        grid_spec=pltpu.PrefetchScalarGridSpec(
            num_scalar_prefetch=0,
            grid=grid,
            in_specs=[
                pl.BlockSpec((c, tile), lambda ci, ti: (0, col_block(ci, ti))),
                pl.BlockSpec((1, tile), lambda ci, ti: (0, col_block(ci, ti))),
                pl.BlockSpec((1, tile), lambda ci, ti: (0, col_block(ci, ti))),
            ],
            out_specs=[
                pl.BlockSpec((8, 128), lambda ci, ti: (ci, 0)),
                pl.BlockSpec((8, 128), lambda ci, ti: (ci, 0)),
            ],
            scratch_shapes=[pltpu.VMEM((1, chunk), jnp.float32),
                            pltpu.VMEM((1, chunk), jnp.float32)],
        ),
        compiler_params=pltpu.CompilerParams(
            dimension_semantics=("parallel", "arbitrary"),
            vmem_limit_bytes=vmem_limit,
            allow_input_fusion=([True, False, False] if fused_transpose else None),
        ),
    )(logits_cm, targets2d, weights2d)

    # Each core broadcast-filled its (8, 128) output block with its partial sum.
    num = num_out[::8, 0].sum()
    den = den_out[::8, 0].sum()
    return num / den


def gce_loss_ref(logits, targets, weights, *, q=0.7, ignore_index=1000):
    """Pure-JAX reference (masked instead of filtered; same value)."""
    valid = targets != ignore_index
    pred = jax.nn.softmax(logits.astype(jnp.float32), axis=-1)
    # Mask targets BEFORE the gather: ignore_index is out of range.
    tgt_safe = jnp.where(valid, targets, 0).astype(jnp.int32)
    p_t = jnp.take_along_axis(pred, tgt_safe[:, None], axis=-1)[:, 0]
    loss = (1.0 - p_t ** q) / q
    w = weights.astype(jnp.float32) * valid.astype(jnp.float32)
    return jnp.sum(loss * w) / jnp.sum(w)


if __name__ == "__main__":
    key = jax.random.PRNGKey(0)
    k1, k2, k3, k4 = jax.random.split(key, 4)

    # ~500 flattened samples, 8 classes (logits are [num_samples, classes]).
    N, C = 500, 8
    IGNORE = 1000
    Q = 0.7

    logits = jax.random.normal(k1, (N, C), dtype=jnp.float32)
    targets = jax.random.randint(k2, (N,), 0, C, dtype=jnp.int32)
    ignore_mask = jax.random.bernoulli(k3, 0.2, (N,))
    targets = jnp.where(ignore_mask, IGNORE, targets)
    weights = jax.random.uniform(k4, (N,), dtype=jnp.float32, minval=0.1, maxval=1.0)

    ref = gce_loss_ref(logits, targets, weights, q=Q, ignore_index=IGNORE)

    # Multi-tile path: tile_n=128 -> 4 tiles, partially masked edge tile.
    out_small = jax.block_until_ready(
        gce_loss(logits, targets, weights, q=Q, ignore_index=IGNORE, tile_n=128))
    assert jnp.allclose(out_small, ref, rtol=1e-4, atol=1e-6), (out_small, ref)

    # Default auto-tile path (single tile here since N is small).
    out = jax.block_until_ready(
        gce_loss(logits, targets, weights, q=Q, ignore_index=IGNORE))
    assert jnp.allclose(out, ref, rtol=1e-4, atol=1e-6), (out, ref)

    # Class-major caller contract: no transpose anywhere.
    out_cm = jax.block_until_ready(
        gce_loss(jnp.transpose(logits), targets, weights, q=Q,
                 ignore_index=IGNORE, logits_class_major=True))
    assert jnp.allclose(out_cm, ref, rtol=1e-4, atol=1e-6), (out_cm, ref)

    # bf16 logits (preferred dtype on v6e/v7x: halves the dominant HBM stream).
    logits_bf16 = logits.astype(jnp.bfloat16)
    ref_bf16 = gce_loss_ref(logits_bf16, targets, weights, q=Q, ignore_index=IGNORE)
    out_bf16 = jax.block_until_ready(
        gce_loss(logits_bf16, targets, weights, q=Q, ignore_index=IGNORE))
    assert jnp.allclose(out_bf16, ref_bf16, rtol=5e-3, atol=1e-5), (out_bf16, ref_bf16)

    print("KERNEL_OK")
</pallas_src>

<mosaic_0001>
module attributes {stable_mosaic.version = 11 : i64} {
  func.func @_gce_kernel(%arg0: i32, %arg1: i32, %arg2: memref<8x128xf32, #tpu.memory_space<vmem>>, %arg3: memref<1x128xi32, #tpu.memory_space<vmem>>, %arg4: memref<1x128xf32, #tpu.memory_space<vmem>>, %arg5: memref<8x128xf32, #tpu.memory_space<vmem>>, %arg6: memref<8x128xf32, #tpu.memory_space<vmem>>, %arg7: memref<1x128xf32, #tpu.memory_space<vmem>>, %arg8: memref<1x128xf32, #tpu.memory_space<vmem>>) attributes {dimension_semantics = [#tpu.dimension_semantics<parallel>, #tpu.dimension_semantics<arbitrary>], iteration_bounds = array<i64: 1, 4>, scalar_prefetch = 0 : i64, scratch_operands = 2 : i64, tpu.core_type = #tpu.core_type<tc>, window_params = [{transform_indices = @transform_0, window_bounds = array<i64: 8, 128>}, {transform_indices = @transform_1, window_bounds = array<i64: 1, 128>}, {transform_indices = @transform_2, window_bounds = array<i64: 1, 128>}, {transform_indices = @transform_3, window_bounds = array<i64: 8, 128>}, {transform_indices = @transform_4, window_bounds = array<i64: 8, 128>}]} {
    %c0_i32 = arith.constant 0 : i32
    %0 = arith.cmpi eq, %arg1, %c0_i32 : i32
    %1 = arith.extui %0 : i1 to i32
    %c0_i32_0 = arith.constant 0 : i32
    %2 = arith.cmpi ne, %1, %c0_i32_0 : i32
    scf.if %2 {
      %cst_24 = arith.constant 0.000000e+00 : f32
      %56 = vector.broadcast %cst_24 : f32 to vector<1x128xf32>
      %c0_25 = arith.constant 0 : index
      %c0_26 = arith.constant 0 : index
      %57 = vector.load %arg7[%c0_25, %c0_26] : memref<1x128xf32, #tpu.memory_space<vmem>>, vector<1x128xf32>
      tpu.vector_store %arg7[%c0_25, %c0_26], %56 {strides = array<i32>} : memref<1x128xf32, #tpu.memory_space<vmem>>, vector<1x128xf32>,
      %cst_27 = arith.constant 0.000000e+00 : f32
      %58 = vector.broadcast %cst_27 : f32 to vector<1x128xf32>
      %c0_28 = arith.constant 0 : index
      %c0_29 = arith.constant 0 : index
      %59 = vector.load %arg8[%c0_28, %c0_29] : memref<1x128xf32, #tpu.memory_space<vmem>>, vector<1x128xf32>
      tpu.vector_store %arg8[%c0_28, %c0_29], %58 {strides = array<i32>} : memref<1x128xf32, #tpu.memory_space<vmem>>, vector<1x128xf32>,
    } else {
    }
    %c4_i32 = arith.constant 4 : i32
    %3 = arith.muli %arg0, %c4_i32 : i32
    %4 = arith.addi %3, %arg1 : i32
    %c128_i32 = arith.constant 128 : i32
    %5 = arith.muli %4, %c128_i32 : i32
    %6 = tpu.iota {dimensions = array<i32: 0>} : vector<8x128xi32>
    %7 = tpu.iota {dimensions = array<i32: 1>} : vector<1x128xi32>
    %c0 = arith.constant 0 : index
    %c0_1 = arith.constant 0 : index
    %8 = vector.load %arg2[%c0, %c0_1] : memref<8x128xf32, #tpu.memory_space<vmem>>, vector<8x128xf32>
    %c0_2 = arith.constant 0 : index
    %c0_3 = arith.constant 0 : index
    %9 = vector.load %arg3[%c0_2, %c0_3] : memref<1x128xi32, #tpu.memory_space<vmem>>, vector<1x128xi32>
    %c0_4 = arith.constant 0 : index
    %c0_5 = arith.constant 0 : index
    %10 = vector.load %arg4[%c0_4, %c0_5] : memref<1x128xf32, #tpu.memory_space<vmem>>, vector<1x128xf32>
    %cst = arith.constant dense<0xFF800000> : vector<128xf32>
    %11 = vector.multi_reduction <maximumf>, %8, %cst [0] : vector<8x128xf32> to vector<128xf32>
    %12 = vector.shape_cast %11 : vector<128xf32> to vector<1x128xf32>
    %13 = vector.broadcast %12 : vector<1x128xf32> to vector<8x128xf32>
    %14 = arith.subf %8, %13 : vector<8x128xf32>
    %15 = math.exp %14 : vector<8x128xf32>
    %cst_6 = arith.constant dense<0.000000e+00> : vector<128xf32>
    %16 = vector.multi_reduction <add>, %15, %cst_6 [0] : vector<8x128xf32> to vector<128xf32>
    %17 = vector.shape_cast %16 : vector<128xf32> to vector<1x128xf32>
    %18 = math.log %17 : vector<1x128xf32>
    %19 = arith.addf %12, %18 : vector<1x128xf32>
    %20 = vector.broadcast %9 : vector<1x128xi32> to vector<8x128xi32>
    %21 = arith.cmpi eq, %6, %20 : vector<8x128xi32>
    %cst_7 = arith.constant 0.000000e+00 : f32
    %22 = vector.broadcast %cst_7 : f32 to vector<8x128xf32>
    %23 = arith.select %21, %8, %22 : vector<8x128xi1>, vector<8x128xf32>
    %cst_8 = arith.constant dense<0.000000e+00> : vector<128xf32>
    %24 = vector.multi_reduction <add>, %23, %cst_8 [0] : vector<8x128xf32> to vector<128xf32>
    %25 = vector.shape_cast %24 : vector<128xf32> to vector<1x128xf32>
    %26 = arith.subf %25, %19 : vector<1x128xf32>
    %cst_9 = arith.constant 0.699999988 : f32
    %27 = vector.broadcast %cst_9 : f32 to vector<1x128xf32>
    %28 = arith.mulf %27, %26 : vector<1x128xf32>
    %29 = math.exp %28 : vector<1x128xf32>
    %cst_10 = arith.constant 1.000000e+00 : f32
    %30 = vector.broadcast %cst_10 : f32 to vector<1x128xf32>
    %31 = arith.subf %30, %29 : vector<1x128xf32>
    %cst_11 = arith.constant 1.42857146 : f32
    %32 = vector.broadcast %cst_11 : f32 to vector<1x128xf32>
    %33 = arith.mulf %31, %32 : vector<1x128xf32>
    %c0_i32_12 = arith.constant 0 : i32
    %34 = arith.addi %5, %c0_i32_12 : i32
    %35 = vector.broadcast %34 : i32 to vector<1x128xi32>
    %36 = arith.addi %35, %7 : vector<1x128xi32>
    %c500_i32 = arith.constant 500 : i32
    %37 = vector.broadcast %c500_i32 : i32 to vector<1x128xi32>
    %38 = arith.cmpi slt, %36, %37 : vector<1x128xi32>
    %c1000_i32 = arith.constant 1000 : i32
    %39 = vector.broadcast %c1000_i32 : i32 to vector<1x128xi32>
    %40 = arith.cmpi ne, %9, %39 : vector<1x128xi32>
    %41 = arith.andi %38, %40 : vector<1x128xi1>
    %c0_13 = arith.constant 0 : index
    %c0_14 = arith.constant 0 : index
    %42 = vector.load %arg7[%c0_13, %c0_14] : memref<1x128xf32, #tpu.memory_space<vmem>>, vector<1x128xf32>
    %43 = arith.mulf %33, %10 : vector<1x128xf32>
    %cst_15 = arith.constant 0.000000e+00 : f32
    %44 = vector.broadcast %cst_15 : f32 to vector<1x128xf32>
    %45 = arith.select %41, %43, %44 : vector<1x128xi1>, vector<1x128xf32>
    %46 = arith.addf %42, %45 : vector<1x128xf32>
    %c0_16 = arith.constant 0 : index
    %c0_17 = arith.constant 0 : index
    %47 = vector.load %arg7[%c0_16, %c0_17] : memref<1x128xf32, #tpu.memory_space<vmem>>, vector<1x128xf32>
    tpu.vector_store %arg7[%c0_16, %c0_17], %46 {strides = array<i32>} : memref<1x128xf32, #tpu.memory_space<vmem>>, vector<1x128xf32>,
    %c0_18 = arith.constant 0 : index
    %c0_19 = arith.constant 0 : index
    %48 = vector.load %arg8[%c0_18, %c0_19] : memref<1x128xf32, #tpu.memory_space<vmem>>, vector<1x128xf32>
    %cst_20 = arith.constant 0.000000e+00 : f32
    %49 = vector.broadcast %cst_20 : f32 to vector<1x128xf32>
    %50 = arith.select %41, %10, %49 : vector<1x128xi1>, vector<1x128xf32>
    %51 = arith.addf %48, %50 : vector<1x128xf32>
    %c0_21 = arith.constant 0 : index
    %c0_22 = arith.constant 0 : index
    %52 = vector.load %arg8[%c0_21, %c0_22] : memref<1x128xf32, #tpu.memory_space<vmem>>, vector<1x128xf32>
    tpu.vector_store %arg8[%c0_21, %c0_22], %51 {strides = array<i32>} : memref<1x128xf32, #tpu.memory_space<vmem>>, vector<1x128xf32>,
    %c3_i32 = arith.constant 3 : i32
    %53 = arith.cmpi eq, %arg1, %c3_i32 : i32
    %54 = arith.extui %53 : i1 to i32
    %c0_i32_23 = arith.constant 0 : i32
    %55 = arith.cmpi ne, %54, %c0_i32_23 : i32
    scf.if %55 {
      %c0_24 = arith.constant 0 : index
      %c0_25 = arith.constant 0 : index
      %56 = vector.load %arg7[%c0_24, %c0_25] : memref<1x128xf32, #tpu.memory_space<vmem>>, vector<1x128xf32>
      %57 = vector.shape_cast %56 : vector<1x128xf32> to vector<1x1x128xf32>
      %cst_26 = arith.constant dense<0.000000e+00> : vector<1xf32>
      %58 = vector.multi_reduction <add>, %57, %cst_26 [1, 2] : vector<1x1x128xf32> to vector<1xf32>
      %59 = vector.shape_cast %58 : vector<1xf32> to vector<1x1x1xf32>
      %60 = vector.extract %59[0, 0, 0] : f32 from vector<1x1x1xf32>
      %61 = vector.broadcast %60 : f32 to vector<8x128xf32>
      %c0_27 = arith.constant 0 : index
      %c0_28 = arith.constant 0 : index
      %62 = vector.load %arg5[%c0_27, %c0_28] : memref<8x128xf32, #tpu.memory_space<vmem>>, vector<8x128xf32>
      tpu.vector_store %arg5[%c0_27, %c0_28], %61 {strides = array<i32>} : memref<8x128xf32, #tpu.memory_space<vmem>>, vector<8x128xf32>,
      %c0_29 = arith.constant 0 : index
      %c0_30 = arith.constant 0 : index
      %63 = vector.load %arg8[%c0_29, %c0_30] : memref<1x128xf32, #tpu.memory_space<vmem>>, vector<1x128xf32>
      %64 = vector.shape_cast %63 : vector<1x128xf32> to vector<1x1x128xf32>
      %cst_31 = arith.constant dense<0.000000e+00> : vector<1xf32>
      %65 = vector.multi_reduction <add>, %64, %cst_31 [1, 2] : vector<1x1x128xf32> to vector<1xf32>
      %66 = vector.shape_cast %65 : vector<1xf32> to vector<1x1x1xf32>
      %67 = vector.extract %66[0, 0, 0] : f32 from vector<1x1x1xf32>
      %68 = vector.broadcast %67 : f32 to vector<8x128xf32>
      %c0_32 = arith.constant 0 : index
      %c0_33 = arith.constant 0 : index
      %69 = vector.load %arg6[%c0_32, %c0_33] : memref<8x128xf32, #tpu.memory_space<vmem>>, vector<8x128xf32>
      tpu.vector_store %arg6[%c0_32, %c0_33], %68 {strides = array<i32>} : memref<8x128xf32, #tpu.memory_space<vmem>>, vector<8x128xf32>,
    } else {
    }
    return
  }
  func.func @transform_0(%arg0: i32, %arg1: i32) -> (i32, i32) {
    %c4_i32 = arith.constant 4 : i32
    %0 = arith.muli %arg0, %c4_i32 : i32
    %1 = arith.addi %0, %arg1 : i32
    %c3_i32 = arith.constant 3 : i32
    %2 = arith.minsi %1, %c3_i32 : i32
    %c0_i32 = arith.constant 0 : i32
    %c0_i32_0 = arith.constant 0 : i32
    return %c0_i32, %2 : i32, i32
  }
  func.func @transform_1(%arg0: i32, %arg1: i32) -> (i32, i32) {
    %c4_i32 = arith.constant 4 : i32
    %0 = arith.muli %arg0, %c4_i32 : i32
    %1 = arith.addi %0, %arg1 : i32
    %c3_i32 = arith.constant 3 : i32
    %2 = arith.minsi %1, %c3_i32 : i32
    %c0_i32 = arith.constant 0 : i32
    %c0_i32_0 = arith.constant 0 : i32
    return %c0_i32, %2 : i32, i32
  }
  func.func @transform_2(%arg0: i32, %arg1: i32) -> (i32, i32) {
    %c4_i32 = arith.constant 4 : i32
    %0 = arith.muli %arg0, %c4_i32 : i32
    %1 = arith.addi %0, %arg1 : i32
    %c3_i32 = arith.constant 3 : i32
    %2 = arith.minsi %1, %c3_i32 : i32
    %c0_i32 = arith.constant 0 : i32
    %c0_i32_0 = arith.constant 0 : i32
    return %c0_i32, %2 : i32, i32
  }
  func.func @transform_3(%arg0: i32, %arg1: i32) -> (i32, i32) {
    %c0_i32 = arith.constant 0 : i32
    %c0_i32_0 = arith.constant 0 : i32
    return %arg0, %c0_i32 : i32, i32
  }
  func.func @transform_4(%arg0: i32, %arg1: i32) -> (i32, i32) {
    %c0_i32 = arith.constant 0 : i32
    %c0_i32_0 = arith.constant 0 : i32
    return %arg0, %c0_i32 : i32, i32
  }
}

</mosaic_0001>

<llo_original>
// kernel: tpu_custom_call.1
$region0: #{tpu_custom_call.1}
  #allocation0 [shape = 'u32[]', space=smem, size = 0x4, offset = 0x4, fixed_abs, tag = 'smem constant byte address 0x4 - core index']
  #allocation1 [shape = 'u32[144,128]{1,0:T(1,128)}', space=vmem, size = 0x12000, scoped, tag = 'internal scratch']
  #allocation2 [shape = 'f32[1,128]{1,0:T(1,128)}', space=vmem, size = 0x200, scoped, tag = 'scratch operand']
  #allocation3 [shape = 'f32[1,128]{1,0:T(1,128)}', space=vmem, size = 0x200, scoped, tag = 'scratch operand']
  %s0 = inlined_call_operand.hbm [shape: f32[8,500], index: 0, kind: input, shape index: {}]
  %s1 = inlined_call_operand.hbm [shape: s32[1,500], index: 1, kind: input, shape index: {}]
  %s2 = inlined_call_operand.hbm [shape: f32[1,500], index: 2, kind: input, shape index: {}]
  %s3 = inlined_call_operand.hbm [shape: f32[8,128], index: 3, kind: output, shape index: {0}]
  %s4 = inlined_call_operand.hbm [shape: f32[8,128], index: 4, kind: output, shape index: {1}]
  %5 = xla_tuple %s3, %s4
  %s6 = sld [smem:[#allocation0]]
  $region73: #{tpu_custom_call.1} parent=0
    _
  %s8 = ssub.s32 1, %s6
  %s9 = scalar_select 0, %s8, %s6
  $region1: #{tpu_custom_call.1} parent=0
    #allocation4 [shape = 'u8[8192]{0}', space=vmem, size = 0x2000, scoped, tag = 'input window, operand 0']
    #allocation5 [shape = 's32[2]{0}', space=sflag, size = 0x8, scoped, tag = 'scoped memory for tpu_custom_call.1']
    #allocation6 [shape = 's32[2]{0}', space=sflag, size = 0x8, scoped, tag = 'scoped memory for tpu_custom_call.1']
    #allocation7 [shape = 'u8[1024]{0}', space=vmem, size = 0x400, scoped, tag = 'input window, operand 1']
    #allocation8 [shape = 's32[2]{0}', space=sflag, size = 0x8, scoped, tag = 'scoped memory for tpu_custom_call.1']
    #allocation9 [shape = 'u8[1024]{0}', space=vmem, size = 0x400, scoped, tag = 'input window, operand 2']
    #allocation10 [shape = 'u8[4096]{0}', space=vmem, size = 0x1000, scoped, tag = 'output window, operand 0, single buffered']
    #allocation11 [shape = 'u8[4096]{0}', space=vmem, size = 0x1000, scoped, tag = 'output window, operand 1, single buffered']
    #allocation12 [shape = 's32[1]{0}', space=sflag, size = 0x4, scoped, tag = 'scoped memory for tpu_custom_call.1']
    %10 = vsyncpa [#allocation5], 0
    %s11 = scalar_lea.sflag [#allocation5], 1
    %12 = vsyncpa %s11, 0
    %13 = vsyncpa [#allocation8], 0
    %s14 = scalar_lea.sflag [#allocation8], 1
    %15 = vsyncpa %s14, 0
    %16 = vsyncpa [#allocation6], 0
    %17 = vsyncpa [#allocation12], 0
    loop: start=0, step=1, limit=6
    $region2: #{tpu_custom_call.1} parent=1 // loop_pre_header
      _
    $region3: #{tpu_custom_call.1} parent=1 // loop_header
      %s19 = sphi 0, %s23
      %p20 = scmp.ge.s32.totalorder %s19, 6
      %s26 = sphi 0, %s38
      %s27 = sphi 0, %s34
      %s28 = sphi 0, %s26
      %s29 = sphi 0, %s27
      %s30 = sphi 0, %s28
      %s31 = sphi 0, %s29
      %s49 = sphi 0, %s51
      %s52 = sphi 0, %s49
      %s53 = sphi 0, %s52
      %s69 = sphi 0, %s53
      %s83 = sphi 0, %s85
      %s86 = sphi 0, %s83
      %s87 = sphi 0, %s86
      %s103 = sphi 0, %s87
      %s117 = sphi 0, %s119
      %s120 = sphi 0, %s117
      %s121 = sphi 0, %s120
      %s137 = sphi 0, %s121
      %s143 = sphi 0, %s145
      %s146 = sphi 0, %s143
      %s147 = sphi 0, %s146
      %s163 = sphi 0, %s147
      %s169 = sphi 0, %s171
      %s172 = sphi 0, %s169
      %s173 = sphi 0, %s172
      %s189 = sphi 0, %s173
    $region4: #{tpu_custom_call.1} parent=1 // loop_header_branch
      %22 = sbr.rel (%p20) target = $region8
    $region5: #{tpu_custom_call.1} parent=1 // loop_body
      %s24 = ssub.s32 %s19, 1
      %s25 = ssub.s32 %s19, 2
      %s32 = sadd.s32 1, %s27
      %p33 = scmp.ge.s32.totalorder %s32, 4
      %s34 = scalar_select %p33, 0, %s32
      %s35 = sadd.s32 1, %s26
      %s36 = scalar_select %p33, %s35, %s26
      %p37 = scmp.ge.s32.totalorder %s36, 1
      %s38 = scalar_select %p37, 0, %s36
      %s39 = smul.u32 %s26, 4
      %s40 = sadd.s32 %s39, %s27
      %p41 = scmp.lt.s32.totalorder %s40, 3
      %s42 = scalar_select %p41, %s40, 3
      %s43 = smul.u32 %s38, 4
      %s44 = sadd.s32 %s43, %s34
      %p45 = scmp.lt.s32.totalorder %s44, 3
      %s46 = scalar_select %p45, %s44, 3
      %s47 = ssub.s32 %s42, %s46
      %p48 = scmp.eq.s32.totalorder %s47, 0
      %s50 = sadd.s32 %s49, 1
      %s51 = scalar_select %p48, %s49, %s50
      %p54 = pneg %p48
      %p55 = scmp.eq.s32.totalorder %s19, 3
      %p56 = por %p54, %p55
      %p57 = scmp.ne.s32.totalorder %s49, %s52
      %p58 = scmp.eq.s32.totalorder %s19, 0
      %p59 = por %p57, %p58
      %p60 = scmp.ne.s32.totalorder %s49, %s52
      %p61 = scmp.eq.s32.totalorder %s24, 3
      %p62 = por %p60, %p61
      %p63 = scmp.ne.s32.totalorder %s52, %s53
      %p64 = scmp.eq.s32.totalorder %s24, 0
      %p65 = por %p63, %p64
      %p66 = scmp.ne.s32.totalorder %s52, %s53
      %p67 = scmp.eq.s32.totalorder %s25, 3
      %p68 = por %p66, %p67
      %p70 = scmp.ne.s32.totalorder %s53, %s69
      %p71 = scmp.eq.s32.totalorder %s25, 0
      %p72 = por %p70, %p71
      %s73 = smul.u32 %s26, 4
      %s74 = sadd.s32 %s73, %s27
      %p75 = scmp.lt.s32.totalorder %s74, 3
      %s76 = scalar_select %p75, %s74, 3
      %s77 = smul.u32 %s38, 4
      %s78 = sadd.s32 %s77, %s34
      %p79 = scmp.lt.s32.totalorder %s78, 3
      %s80 = scalar_select %p79, %s78, 3
      %s81 = ssub.s32 %s76, %s80
      %p82 = scmp.eq.s32.totalorder %s81, 0
      %s84 = sadd.s32 %s83, 1
      %s85 = scalar_select %p82, %s83, %s84
      %p88 = pneg %p82
      %p89 = scmp.eq.s32.totalorder %s19, 3
      %p90 = por %p88, %p89
      %p91 = scmp.ne.s32.totalorder %s83, %s86
      %p92 = scmp.eq.s32.totalorder %s19, 0
      %p93 = por %p91, %p92
      %p94 = scmp.ne.s32.totalorder %s83, %s86
      %p95 = scmp.eq.s32.totalorder %s24, 3
      %p96 = por %p94, %p95
      %p97 = scmp.ne.s32.totalorder %s86, %s87
      %p98 = scmp.eq.s32.totalorder %s24, 0
      %p99 = por %p97, %p98
      %p100 = scmp.ne.s32.totalorder %s86, %s87
      %p101 = scmp.eq.s32.totalorder %s25, 3
      %p102 = por %p100, %p101
      %p104 = scmp.ne.s32.totalorder %s87, %s103
      %p105 = scmp.eq.s32.totalorder %s25, 0
      %p106 = por %p104, %p105
      %s107 = smul.u32 %s26, 4
      %s108 = sadd.s32 %s107, %s27
      %p109 = scmp.lt.s32.totalorder %s108, 3
      %s110 = scalar_select %p109, %s108, 3
      %s111 = smul.u32 %s38, 4
      %s112 = sadd.s32 %s111, %s34
      %p113 = scmp.lt.s32.totalorder %s112, 3
      %s114 = scalar_select %p113, %s112, 3
      %s115 = ssub.s32 %s110, %s114
      %p116 = scmp.eq.s32.totalorder %s115, 0
      %s118 = sadd.s32 %s117, 1
      %s119 = scalar_select %p116, %s117, %s118
      %p122 = pneg %p116
      %p123 = scmp.eq.s32.totalorder %s19, 3
      %p124 = por %p122, %p123
      %p125 = scmp.ne.s32.totalorder %s117, %s120
      %p126 = scmp.eq.s32.totalorder %s19, 0
      %p127 = por %p125, %p126
      %p128 = scmp.ne.s32.totalorder %s117, %s120
      %p129 = scmp.eq.s32.totalorder %s24, 3
      %p130 = por %p128, %p129
      %p131 = scmp.ne.s32.totalorder %s120, %s121
      %p132 = scmp.eq.s32.totalorder %s24, 0
      %p133 = por %p131, %p132
      %p134 = scmp.ne.s32.totalorder %s120, %s121
      %p135 = scmp.eq.s32.totalorder %s25, 3
      %p136 = por %p134, %p135
      %p138 = scmp.ne.s32.totalorder %s121, %s137
      %p139 = scmp.eq.s32.totalorder %s25, 0
      %p140 = por %p138, %p139
      %s141 = ssub.s32 %s26, %s38
      %p142 = scmp.eq.s32.totalorder %s141, 0
      %s144 = sadd.s32 %s143, 1
      %s145 = scalar_select %p142, %s143, %s144
      %p148 = pneg %p142
      %p149 = scmp.eq.s32.totalorder %s19, 3
      %p150 = por %p148, %p149
      %p151 = scmp.ne.s32.totalorder %s143, %s146
      %p152 = scmp.eq.s32.totalorder %s19, 0
      %p153 = por %p151, %p152
      %p154 = scmp.ne.s32.totalorder %s143, %s146
      %p155 = scmp.eq.s32.totalorder %s24, 3
      %p156 = por %p154, %p155
      %p157 = scmp.ne.s32.totalorder %s146, %s147
      %p158 = scmp.eq.s32.totalorder %s24, 0
      %p159 = por %p157, %p158
      %p160 = scmp.ne.s32.totalorder %s146, %s147
      %p161 = scmp.eq.s32.totalorder %s25, 3
      %p162 = por %p160, %p161
      %p164 = scmp.ne.s32.totalorder %s147, %s163
      %p165 = scmp.eq.s32.totalorder %s25, 0
      %p166 = por %p164, %p165
      %s167 = ssub.s32 %s26, %s38
      %p168 = scmp.eq.s32.totalorder %s167, 0
      %s170 = sadd.s32 %s169, 1
      %s171 = scalar_select %p168, %s169, %s170
      %p174 = pneg %p168
      %p175 = scmp.eq.s32.totalorder %s19, 3
      %p176 = por %p174, %p175
      %p177 = scmp.ne.s32.totalorder %s169, %s172
      %p178 = scmp.eq.s32.totalorder %s19, 0
      %p179 = por %p177, %p178
      %p180 = scmp.ne.s32.totalorder %s169, %s172
      %p181 = scmp.eq.s32.totalorder %s24, 3
      %p182 = por %p180, %p181
      %p183 = scmp.ne.s32.totalorder %s172, %s173
      %p184 = scmp.eq.s32.totalorder %s24, 0
      %p185 = por %p183, %p184
      %p186 = scmp.ne.s32.totalorder %s172, %s173
      %p187 = scmp.eq.s32.totalorder %s25, 3
      %p188 = por %p186, %p187
      %p190 = scmp.ne.s32.totalorder %s173, %s189
      %p191 = scmp.eq.s32.totalorder %s25, 0
      %p192 = por %p190, %p191
      %p193 = scmp.le.s32.totalorder 1, %s19
      %p194 = scmp.lt.s32.totalorder %s19, 5
      %p195 = pnand %p193, %p194
      %p196 = pneg %p195
      // Predicated region
      $region9: #{tpu_custom_call.1} parent=5 // pred_check
        _
      $region10: #{tpu_custom_call.1} parent=5 // pred_check_branch
        %198 = sbr.rel (%p195) target = $region12
      $region11: #{tpu_custom_call.1} parent=5 // pred_region
        %s199 = ssub.s32 %s19, 1
      $region12: #{tpu_custom_call.1} parent=5 // pred_fallthru
        _
      %p200 = scmp.lt.s32.totalorder %s19, 4
      // Predicated region
      $region13: #{tpu_custom_call.1} parent=5 // pred_check
        %p201 = pneg %p200
      $region14: #{tpu_custom_call.1} parent=5 // pred_check_branch
        %203 = sbr.rel (%p201) target = $region16
      $region15: #{tpu_custom_call.1} parent=5 // pred_region
        // Predicated region
        $region17: #{tpu_custom_call.1} parent=15 // pred_check
          %p204 = pneg %p59
        $region18: #{tpu_custom_call.1} parent=15 // pred_check_branch
          %206 = sbr.rel (%p204) target = $region20
        $region19: #{tpu_custom_call.1} parent=15 // pred_region
          %s207 = sand.u32 %s49, 1
          %s208 = scalar_lea.sflag [#allocation5], %s207
          %s209 = sand.u32 %s49, 1
          %s210 = smul.addr %s209, 8
          %s211 = scalar_lea.vmem [#allocation4], %s210
          %s212 = smul.u32 %s26, 4
          %s213 = sadd.s32 %s212, %s27
          %p214 = scmp.lt.s32.totalorder %s213, 3
          %s215 = scalar_select %p214, %s213, 3
          %s217 = ssub.s32 128, 128
          %218 = vsyncadd %s208, %s217
          %s219 = smul.addr %s215, 128
          %s220 = scalar_lea.hbm %s0, %s219
          %s222 = sshll.u32 %s211, 4
          %s223 = int_to_ptr.vmem [resolvable:$true] %s222
          %225 = dma.hbm_to_vmem [thread:$0]  %s220, 128, %s223, %s208
        $region20: #{tpu_custom_call.1} parent=15 // pred_fallthru
          _
        // Predicated region
        $region21: #{tpu_custom_call.1} parent=15 // pred_check
          %p226 = pneg %p93
        $region22: #{tpu_custom_call.1} parent=15 // pred_check_branch
          %228 = sbr.rel (%p226) target = $region24
        $region23: #{tpu_custom_call.1} parent=15 // pred_region
          %s229 = sand.u32 %s19, 1
          %s230 = scalar_lea.sflag [#allocation8], %s229
          %s231 = sand.u32 %s83, 1
          %s232 = scalar_lea.vmem [#allocation7], %s231
          %s233 = smul.u32 %s26, 4
          %s234 = sadd.s32 %s233, %s27
          %p235 = scmp.lt.s32.totalorder %s234, 3
          %s236 = scalar_select %p235, %s234, 3
          %s238 = ssub.s32 16, 16
          %239 = vsyncadd %s230, %s238
          %s240 = smul.addr %s236, 16
          %s241 = scalar_lea.hbm %s1, %s240
          %s243 = sshll.u32 %s232, 4
          %s244 = int_to_ptr.vmem [resolvable:$true] %s243
          %246 = dma.hbm_to_vmem [thread:$0]  %s241, 16, %s244, %s230
        $region24: #{tpu_custom_call.1} parent=15 // pred_fallthru
          _
        // Predicated region
        $region25: #{tpu_custom_call.1} parent=15 // pred_check
          %p247 = pneg %p127
        $region26: #{tpu_custom_call.1} parent=15 // pred_check_branch
          %249 = sbr.rel (%p247) target = $region28
        $region27: #{tpu_custom_call.1} parent=15 // pred_region
          %s250 = sand.u32 %s19, 1
          %s251 = scalar_lea.sflag [#allocation8], %s250
          %s252 = sand.u32 %s117, 1
          %s253 = scalar_lea.vmem [#allocation9], %s252
          %s254 = smul.u32 %s26, 4
          %s255 = sadd.s32 %s254, %s27
          %p256 = scmp.lt.s32.totalorder %s255, 3
          %s257 = scalar_select %p256, %s255, 3
          %s259 = ssub.s32 16, 16
          %260 = vsyncadd %s251, %s259
          %s261 = smul.addr %s257, 16
          %s262 = scalar_lea.hbm %s2, %s261
          %s264 = sshll.u32 %s253, 4
          %s265 = int_to_ptr.vmem [resolvable:$true] %s264
          %267 = dma.hbm_to_vmem [thread:$0]  %s262, 16, %s265, %s251
        $region28: #{tpu_custom_call.1} parent=15 // pred_fallthru
          _
      $region16: #{tpu_custom_call.1} parent=5 // pred_fallthru
        _
      %p268 = scmp.le.s32.totalorder 1, %s19
      %p269 = scmp.lt.s32.totalorder %s19, 5
      %p270 = pnand %p268, %p269
      %p271 = pneg %p270
      // Predicated region
      $region29: #{tpu_custom_call.1} parent=5 // pred_check
        _
      $region30: #{tpu_custom_call.1} parent=5 // pred_check_branch
        %273 = sbr.rel (%p270) target = $region32
      $region31: #{tpu_custom_call.1} parent=5 // pred_region
        %s274 = ssub.s32 %s19, 1
        %s275 = sand.u32 %s52, 1
        %s276 = scalar_lea.sflag [#allocation5], %s275
        %s277 = sand.u32 %s52, 1
        %s278 = smul.addr %s277, 8
        %s279 = scalar_lea.vmem [#allocation4], %s278
        // Predicated region
        $region33: #{tpu_custom_call.1} parent=31 // pred_check
          %p280 = pneg %p65
        $region34: #{tpu_custom_call.1} parent=31 // pred_check_branch
          %282 = sbr.rel (%p280) target = $region36
        $region35: #{tpu_custom_call.1} parent=31 // pred_region
          %283 = dma.done %s276, 128
        $region36: #{tpu_custom_call.1} parent=31 // pred_fallthru
          _
        %s284 = sand.u32 %s24, 1
        %s285 = scalar_lea.sflag [#allocation8], %s284
        %s286 = sand.u32 %s86, 1
        %s287 = scalar_lea.vmem [#allocation7], %s286
        // Predicated region
        $region37: #{tpu_custom_call.1} parent=31 // pred_check
          %p288 = pneg %p99
        $region38: #{tpu_custom_call.1} parent=31 // pred_check_branch
          %290 = sbr.rel (%p288) target = $region40
        $region39: #{tpu_custom_call.1} parent=31 // pred_region
          %291 = dma.done %s285, 16
        $region40: #{tpu_custom_call.1} parent=31 // pred_fallthru
          _
        %s292 = sand.u32 %s24, 1
        %s293 = scalar_lea.sflag [#allocation8], %s292
        %s294 = sand.u32 %s120, 1
        %s295 = scalar_lea.vmem [#allocation9], %s294
        // Predicated region
        $region41: #{tpu_custom_call.1} parent=31 // pred_check
          %p296 = pneg %p133
        $region42: #{tpu_custom_call.1} parent=31 // pred_check_branch
          %298 = sbr.rel (%p296) target = $region44
        $region43: #{tpu_custom_call.1} parent=31 // pred_region
          %299 = dma.done %s293, 16
        $region44: #{tpu_custom_call.1} parent=31 // pred_fallthru
          _
        %s300 = sand.u32 %s52, 1
        %s301 = scalar_lea.sflag [#allocation5], %s300
        %s302 = sand.u32 %s52, 1
        %s303 = smul.addr %s302, 8
        %s304 = scalar_lea.vmem [#allocation4], %s303
        %p305 = pneg %p65
        %p306 = pneg %p62
        %s307 = sand.u32 %s24, 1
        %s308 = scalar_lea.sflag [#allocation8], %s307
        %s309 = sand.u32 %s86, 1
        %s310 = scalar_lea.vmem [#allocation7], %s309
        %p311 = pneg %p99
        %p312 = pneg %p96
        %s313 = sand.u32 %s24, 1
        %s314 = scalar_lea.sflag [#allocation8], %s313
        %s315 = sand.u32 %s120, 1
        %s316 = scalar_lea.vmem [#allocation9], %s315
        %p317 = pneg %p133
        %p318 = pneg %p130
        %p319 = pneg %p159
        %p320 = pneg %p156
        %p321 = pneg %p185
        %p322 = pneg %p182
        %s323 = smul.u32 %s28, 4
        %s324 = sadd.s32 %s323, %s29
        %p325 = scmp.lt.s32.totalorder %s324, 3
        %s326 = scalar_select %p325, %s324, 3
        %s327 = smul.u32 %s28, 4
        %s328 = sadd.s32 %s327, %s29
        %p329 = scmp.lt.s32.totalorder %s328, 3
        %s330 = scalar_select %p329, %s328, 3
        %s331 = smul.u32 %s28, 4
        %s332 = sadd.s32 %s331, %s29
        %p333 = scmp.lt.s32.totalorder %s332, 3
        %s334 = scalar_select %p333, %s332, 3
        %p335 = scmp.eq.s32.totalorder %s29, 0
        // Predicated region
        $region45: #{tpu_custom_call.1} parent=31 // pred_check
          %p336 = pneg %p335
        $region46: #{tpu_custom_call.1} parent=31 // pred_check_branch
          %338 = sbr.rel (%p336) target = $region48
        $region47: #{tpu_custom_call.1} parent=31 // pred_region
          %339 = vst [vmem:[#allocation2] sm:$0x1] 0.0
          %340 = vst [vmem:[#allocation3] sm:$0x1] 0.0
        $region48: #{tpu_custom_call.1} parent=31 // pred_fallthru
          _
        %s341 = smul.u32 %s28, 4
        %s342 = sadd.s32 %s341, %s29
        %s343 = smul.u32 %s342, 128
        %v344 = vlaneseq
        %v345 = vshrl.u32 %v344, 7
        %v346 = vlaneseq
        %v347 = vand.u32 %v346, 127
        %v348 = vld [vmem:[%s279] sm:$0xff]
        %v349 = vld [vmem:[%s287] sm:$0x1]
        %v350 = vld [vmem:[%s295] sm:$0x1]
        %v351 = vrot.slane %v348, 4
        %v352 = vmax.f32 %v348, %v351
        %v353 = vrot.slane %v352, 2
        %v354 = vmax.f32 %v352, %v353
        %v355 = vrot.slane %v354, 1
        %v356 = vmax.f32 %v354, %v355
        %v357 = vsub.f32 %v348, %v356
        %v358 = vmul.f32 %v357, 1.442695
        %v359 = vpow.pop %v358
        %v360 = vrot.slane %v359, 4
        %v361 = vadd.f32 %v359, %v360
        %v362 = vrot.slane %v361, 2
        %v363 = vadd.f32 %v361, %v362
        %v364 = vrot.slane %v363, 1
        %v365 = vadd.f32 %v363, %v364
        %v366 = vlog2.pop %v365
        %v367 = vmul.f32 %v366, 0.6931472
        %v368 = vadd.f32 %v356, %v367
        %v369 = vlaneseq
        %v370 = vshrl.u32 %v369, 7
        %v371 = vsub.s32 0, %v370
        %v372 = vrot.slane %v349, %v371
        %vm373 = vcmp.eq.s32.totalorder %v345, %v372
        %v374 = vsel %vm373, %v348, 0.0
        %v375 = vrot.slane %v374, 4
        %v376 = vadd.f32 %v374, %v375
        %v377 = vrot.slane %v376, 2
        %v378 = vadd.f32 %v376, %v377
        %v379 = vrot.slane %v378, 1
        %v380 = vadd.f32 %v378, %v379
        %v381 = vsub.f32 %v380, %v368
        %v382 = vmul.f32 %v381, 0.7
        %v383 = vmul.f32 %v382, 1.442695
        %v384 = vpow.pop %v383
        %v385 = vsub.f32 1.0, %v384
        %v386 = vmul.f32 %v385, 1.4285715
        %v387 = vstv %s343
        %v388 = vadd.s32 %v387, %v347
        %vm389 = vcmp.lt.s32.totalorder %v388, 500
        %vm390 = vcmp.ne.s32.totalorder %v349, 1000
        %vm391 = vmand %vm389, %vm390
        %v392 = vld [vmem:[#allocation2] sm:$0x1]
        %v393 = vmul.f32 %v386, %v350
        %v394 = vsel %vm391, %v393, 0.0
        %v395 = vadd.f32 %v392, %v394
        %396 = vst [vmem:[#allocation2] sm:$0x1] %v395
        %v397 = vld [vmem:[#allocation3] sm:$0x1]
        %v398 = vsel %vm391, %v350, 0.0
        %v399 = vadd.f32 %v397, %v398
        %400 = vst [vmem:[#allocation3] sm:$0x1] %v399
        %p401 = scmp.eq.s32.totalorder %s29, 3
        // Predicated region
        $region49: #{tpu_custom_call.1} parent=31 // pred_check
          %p402 = pneg %p401
        $region50: #{tpu_custom_call.1} parent=31 // pred_check_branch
          %404 = sbr.rel (%p402) target = $region52
        $region51: #{tpu_custom_call.1} parent=31 // pred_region
          %v405 = vld [vmem:[#allocation2] sm:$0x1]
          %vm406 = vcmask 1040384
          %v407 = vsel %vm406, %v405, 0.0
          %408 = vadd.xlane.f32.xlu0 %v407
          %v409 = vpop.xlane.xlu0 %408
          %v410 = vrot.slane %v409, 4
          %v411 = vadd.f32 %v409, %v410
          %v412 = vrot.slane %v411, 2
          %v413 = vadd.f32 %v411, %v412
          %v414 = vrot.slane %v413, 1
          %v415 = vadd.f32 %v413, %v414
          %s416 = vtos %v415
          %v417 = vstv %s416
          %418 = vst [vmem:[#allocation10] sm:$0xff] %v417
          %v419 = vld [vmem:[#allocation3] sm:$0x1]
          %v420 = vsel %vm406, %v419, 0.0
          %421 = vadd.xlane.f32.xlu0 %v420
          %v422 = vpop.xlane.xlu0 %421
          %v423 = vrot.slane %v422, 4
          %v424 = vadd.f32 %v422, %v423
          %v425 = vrot.slane %v424, 2
          %v426 = vadd.f32 %v424, %v425
          %v427 = vrot.slane %v426, 1
          %v428 = vadd.f32 %v426, %v427
          %s429 = vtos %v428
          %v430 = vstv %s429
          %431 = vst [vmem:[#allocation11] sm:$0xff] %v430
        $region52: #{tpu_custom_call.1} parent=31 // pred_fallthru
          _
        // Predicated region
        $region53: #{tpu_custom_call.1} parent=31 // pred_check
          %p432 = pneg %p156
        $region54: #{tpu_custom_call.1} parent=31 // pred_check_branch
          %434 = sbr.rel (%p432) target = $region56
        $region55: #{tpu_custom_call.1} parent=31 // pred_region
          %s436 = ssub.s32 128, 128
          %437 = vsyncadd [#allocation6], %s436
          %s438 = smul.addr %s28, 128
          %s439 = scalar_lea.hbm %s3, %s438
          %s441 = sshll.u32 [#allocation10], 4
          %s442 = int_to_ptr.vmem [resolvable:$true] %s441
          %444 = dma.vmem_to_hbm [thread:$0]  %s442, 128, %s439, [#allocation6]
        $region56: #{tpu_custom_call.1} parent=31 // pred_fallthru
          _
        // Predicated region
        $region57: #{tpu_custom_call.1} parent=31 // pred_check
          %p445 = pneg %p182
        $region58: #{tpu_custom_call.1} parent=31 // pred_check_branch
          %447 = sbr.rel (%p445) target = $region60
        $region59: #{tpu_custom_call.1} parent=31 // pred_region
          %s449 = ssub.s32 128, 128
          %450 = vsyncadd [#allocation12], %s449
          %s451 = smul.addr %s28, 128
          %s452 = scalar_lea.hbm %s4, %s451
          %s454 = sshll.u32 [#allocation11], 4
          %s455 = int_to_ptr.vmem [resolvable:$true] %s454
          %457 = dma.vmem_to_hbm [thread:$0]  %s455, 128, %s452, [#allocation12]
        $region60: #{tpu_custom_call.1} parent=31 // pred_fallthru
          _
        // Predicated region
        $region61: #{tpu_custom_call.1} parent=31 // pred_check
          %p458 = pneg %p156
        $region62: #{tpu_custom_call.1} parent=31 // pred_check_branch
          %460 = sbr.rel (%p458) target = $region64
        $region63: #{tpu_custom_call.1} parent=31 // pred_region
          %461 = dma.done [#allocation6], 128
        $region64: #{tpu_custom_call.1} parent=31 // pred_fallthru
          _
        // Predicated region
        $region65: #{tpu_custom_call.1} parent=31 // pred_check
          %p462 = pneg %p182
        $region66: #{tpu_custom_call.1} parent=31 // pred_check_branch
          %464 = sbr.rel (%p462) target = $region68
        $region67: #{tpu_custom_call.1} parent=31 // pred_region
          %465 = dma.done [#allocation12], 128
        $region68: #{tpu_custom_call.1} parent=31 // pred_fallthru
          _
      $region32: #{tpu_custom_call.1} parent=5 // pred_fallthru
        _
      %p466 = scmp.le.s32.totalorder 2, %s19
      // Predicated region
      $region69: #{tpu_custom_call.1} parent=5 // pred_check
        %p467 = pneg %p466
      $region70: #{tpu_custom_call.1} parent=5 // pred_check_branch
        %469 = sbr.rel (%p467) target = $region72
      $region71: #{tpu_custom_call.1} parent=5 // pred_region
        %s470 = ssub.s32 %s19, 2
      $region72: #{tpu_custom_call.1} parent=5 // pred_fallthru
        _
    $region6: #{tpu_custom_call.1} parent=1 // loop_footer
      %s23 = sadd.s32 1, %s19
    $region7: #{tpu_custom_call.1} parent=1 // loop_footer_branch
      %18 = sbr.rel target = $region3
    $region8: #{tpu_custom_call.1} parent=1 // loop_exit
      _
    %471 = vsyncpa [#allocation5], 1
    %s472 = scalar_lea.sflag [#allocation5], 1
    %473 = vsyncpa %s472, 1
    %474 = vsyncpa [#allocation8], 1
    %s475 = scalar_lea.sflag [#allocation8], 1
    %476 = vsyncpa %s475, 1
    %477 = vsyncpa [#allocation6], 1
    %s478 = scalar_lea.sflag [#allocation6], 1
    %479 = vsyncpa %s478, 1
    %480 = vsyncpa [#allocation12], 1

</llo_original>
